<compile_context>
chip_gen: v5e
topology: v5e:2x2
jax: 0.10.0
libtpu: 0.0.40
codegen_flags: <defaults>
</compile_context>

<pallas_src>
import functools

import jax
import jax.numpy as jnp
from jax.experimental import pallas as pl
from jax.experimental.pallas import tpu as pltpu

LANE = 128  # TPU lane width
NEG_BIG = -1e30  # finite "minus infinity" for padded logit lanes


def _c51_kernel(x_ref, w1_ref, b1_ref, w2_ref, b2_ref, w3_ref, b3_ref,
                red_ref, q_ref):
    # ---- MLP hot path (MXU matmuls + VPU relu) ----
    x = x_ref[...]
    h1 = jnp.dot(x, w1_ref[...], preferred_element_type=jnp.float32) + b1_ref[...]
    h1 = jnp.maximum(h1, 0.0)
    h2 = jnp.dot(h1, w2_ref[...], preferred_element_type=jnp.float32) + b2_ref[...]
    h2 = jnp.maximum(h2, 0.0)
    # logits is (B, padded_AZ): real lanes first, pad lanes are ~NEG_BIG.
    logits = jnp.dot(h2, w3_ref[...], preferred_element_type=jnp.float32) + b3_ref[...]

    # ---- softmax expectation via one row-max, one exp and one MXU matmul ----
    # Global row max: exact because softmax is per-action shift-invariant and
    # the global max upper-bounds each per-action max (exp stays <= 1).  Pad
    # lanes are NEG_BIG (finite) so they never win the max and underflow to 0
    # in exp without producing inf/NaN.
    m = jnp.max(logits, axis=-1, keepdims=True)        # (B, 1)
    e = jnp.exp(logits - m)                            # (B, padded_AZ), full vregs

    # red_ref holds [block-diag supports | block-diag ones], each half padded
    # to 128 lanes; padded rows are zero -> a single MXU matmul yields
    # [per-action numerators | per-action denominators].
    red = jnp.dot(e, red_ref[...], preferred_element_type=jnp.float32)  # (B, 2*LANE)
    num = red[:, :LANE]                                # lane-aligned slice
    den = red[:, LANE:]                                # lane-aligned slice
    # Guard: if every atom of some action sits ~88+ below the global row max,
    # its numerator AND denominator underflow to 0; clamp den to avoid 0/0.
    den = jnp.maximum(den, jnp.float32(1e-30))
    # Padded denominator lanes are >= 1 and padded numerator lanes are 0, so
    # padded output lanes are exactly 0 (no NaN/Inf) -> clean unmasked store.
    q_ref[...] = num / den


def _build_reduction_matrix(supports, n_actions, n_atoms, padded_az):
    """(padded_AZ, 2*LANE): [block-diag supports | block-diag ones], padded."""
    az = n_actions * n_atoms
    sup_col = supports.reshape(n_atoms, 1).astype(jnp.float32)
    eye = jnp.eye(n_actions, dtype=jnp.float32)
    sup_block = jnp.kron(eye, sup_col)                                  # (AZ, A)
    one_block = jnp.kron(eye, jnp.ones((n_atoms, 1), jnp.float32))      # (AZ, A)

    # Numerator half: real block in the top-left, zeros everywhere else
    # (pad rows see e == 0 anyway; pad lanes must give num == 0).
    num_half = jnp.zeros((padded_az, LANE), jnp.float32)
    num_half = num_half.at[:az, :n_actions].set(sup_block)

    # Denominator half: real block top-left, pad lanes filled with ones over
    # every row so den_pad = sum(e) >= 1 > 0 (keeps pad output lanes at 0).
    den_half = jnp.zeros((padded_az, LANE), jnp.float32)
    den_half = den_half.at[:az, :n_actions].set(one_block)
    den_half = den_half.at[:, n_actions:].set(1.0)

    return jnp.concatenate([num_half, den_half], axis=1)               # (padded_AZ, 2*LANE)


def prepare_c51_params(params, supports, n_actions, n_atoms):
    """One-time init: pad the head to a lane-aligned slab and cache red_mat.

    Returns a tuple of device arrays to pass to distributional_network_forward.
    """
    w1, b1, w2, b2, w3, b3 = params
    az = n_actions * n_atoms
    padded_az = int(pl.cdiv(az, LANE)) * LANE           # 204 -> 256

    w3p = jnp.zeros((w3.shape[0], padded_az), jnp.float32).at[:, :az].set(w3)
    b3p = jnp.full((1, padded_az), NEG_BIG, jnp.float32).at[:, :az].set(
        b3.reshape(1, az))
    red_mat = _build_reduction_matrix(supports.reshape(-1), n_actions, n_atoms,
                                      padded_az)
    return (w1.astype(jnp.float32), b1.reshape(1, -1).astype(jnp.float32),
            w2.astype(jnp.float32), b2.reshape(1, -1).astype(jnp.float32),
            w3p, b3p, red_mat)


@functools.partial(jax.jit, static_argnames=("n_actions",))
def distributional_network_forward(x, prepared, *, n_actions):
    """x: (B, n_states) float32 -> Q-values (B, n_actions) float32."""
    w1, b1, w2, b2, w3p, b3p, red_mat = prepared
    B = x.shape[0]
    q_pad = pl.pallas_call(
        _c51_kernel,
        out_shape=jax.ShapeDtypeStruct((B, LANE), jnp.float32),
        # Everything is tiny: full-array blocks, resident in VMEM, no grid.
        in_specs=[pl.BlockSpec(memory_space=pltpu.VMEM)] * 8,
        out_specs=pl.BlockSpec(memory_space=pltpu.VMEM),
    )(x, w1, b1, w2, b2, w3p, b3p, red_mat)
    return q_pad[:, :n_actions]


def _reference_forward(x, params, supports, n_actions, n_atoms):
    w1, b1, w2, b2, w3, b3 = params
    h1 = jax.nn.relu(x @ w1 + b1)
    h2 = jax.nn.relu(h1 @ w2 + b2)
    logits = (h2 @ w3 + b3).reshape(-1, n_actions, n_atoms)
    dist = jax.nn.softmax(logits, axis=-1)
    return jnp.sum(dist * supports.reshape(1, 1, n_atoms), axis=-1)


if __name__ == "__main__":
    # Small, C51-style configuration.
    n_states, n_actions, n_atoms = 32, 4, 51
    Vmin, Vmax = 0.0, 200.0
    batch = 8
    hidden = 128

    delta_z = (Vmax - Vmin) / (n_atoms - 1)
    # torch.arange(Vmin, Vmax + delta_z, delta_z) -> n_atoms evenly spaced values
    supports = (Vmin + delta_z * jnp.arange(n_atoms, dtype=jnp.float32))

    key = jax.random.PRNGKey(0)
    ks = jax.random.split(key, 7)
    scale = 0.05
    w1 = scale * jax.random.normal(ks[0], (n_states, hidden), jnp.float32)
    b1 = scale * jax.random.normal(ks[1], (1, hidden), jnp.float32)
    w2 = scale * jax.random.normal(ks[2], (hidden, hidden), jnp.float32)
    b2 = scale * jax.random.normal(ks[3], (1, hidden), jnp.float32)
    w3 = scale * jax.random.normal(ks[4], (hidden, n_actions * n_atoms), jnp.float32)
    b3 = scale * jax.random.normal(ks[5], (1, n_actions * n_atoms), jnp.float32)
    params = (w1, b1, w2, b2, w3, b3)

    x = jax.random.normal(ks[6], (batch, n_states), jnp.float32)

    # One-time init: cached padded head weights + reduction matrix.
    prepared = jax.tree_util.tree_map(jax.block_until_ready,
                                      prepare_c51_params(params, supports,
                                                         n_actions, n_atoms))

    q = distributional_network_forward(x, prepared, n_actions=n_actions)
    q = jax.block_until_ready(q)

    q_ref = _reference_forward(x, params, supports, n_actions, n_atoms)
    assert q.shape == (batch, n_actions)
    assert jnp.allclose(q, q_ref, rtol=1e-4, atol=1e-3), (q, q_ref)

    print("KERNEL_OK")
</pallas_src>

<mosaic_0001>
module attributes {stable_mosaic.version = 11 : i64} {
  func.func @_c51_kernel(%arg0: memref<8x32xf32, #tpu.memory_space<vmem>>, %arg1: memref<32x128xf32, #tpu.memory_space<vmem>>, %arg2: memref<1x128xf32, #tpu.memory_space<vmem>>, %arg3: memref<128x128xf32, #tpu.memory_space<vmem>>, %arg4: memref<1x128xf32, #tpu.memory_space<vmem>>, %arg5: memref<128x256xf32, #tpu.memory_space<vmem>>, %arg6: memref<1x256xf32, #tpu.memory_space<vmem>>, %arg7: memref<256x256xf32, #tpu.memory_space<vmem>>, %arg8: memref<8x128xf32, #tpu.memory_space<vmem>>) attributes {dimension_semantics = [], scalar_prefetch = 0 : i64, scratch_operands = 0 : i64, tpu.core_type = #tpu.core_type<tc>} {
    %c0 = arith.constant 0 : index
    %c0_0 = arith.constant 0 : index
    %0 = vector.load %arg0[%c0, %c0_0] : memref<8x32xf32, #tpu.memory_space<vmem>>, vector<8x32xf32>
    %c0_1 = arith.constant 0 : index
    %c0_2 = arith.constant 0 : index
    %1 = vector.load %arg1[%c0_1, %c0_2] : memref<32x128xf32, #tpu.memory_space<vmem>>, vector<32x128xf32>
    %cst = arith.constant dense<0.000000e+00> : vector<8x128xf32>
    %2 = tpu.matmul %0, %1, %cst {dimension_numbers = #tpu.dot_dimension_numbers<[1], [0], [0], [1], [0, 0, 1, 1], [], []>} : vector<8x32xf32>, vector<32x128xf32>, vector<8x128xf32> -> vector<8x128xf32>
    %c0_3 = arith.constant 0 : index
    %c0_4 = arith.constant 0 : index
    %3 = vector.load %arg2[%c0_3, %c0_4] : memref<1x128xf32, #tpu.memory_space<vmem>>, vector<1x128xf32>
    %4 = vector.broadcast %3 : vector<1x128xf32> to vector<8x128xf32>
    %5 = arith.addf %2, %4 : vector<8x128xf32>
    %cst_5 = arith.constant 0.000000e+00 : f32
    %6 = vector.broadcast %cst_5 : f32 to vector<8x128xf32>
    %7 = arith.maximumf %5, %6 : vector<8x128xf32>
    %c0_6 = arith.constant 0 : index
    %c0_7 = arith.constant 0 : index
    %8 = vector.load %arg3[%c0_6, %c0_7] : memref<128x128xf32, #tpu.memory_space<vmem>>, vector<128x128xf32>
    %cst_8 = arith.constant dense<0.000000e+00> : vector<8x128xf32>
    %9 = tpu.matmul %7, %8, %cst_8 {dimension_numbers = #tpu.dot_dimension_numbers<[1], [0], [0], [1], [0, 0, 1, 1], [], []>} : vector<8x128xf32>, vector<128x128xf32>, vector<8x128xf32> -> vector<8x128xf32>
    %c0_9 = arith.constant 0 : index
    %c0_10 = arith.constant 0 : index
    %10 = vector.load %arg4[%c0_9, %c0_10] : memref<1x128xf32, #tpu.memory_space<vmem>>, vector<1x128xf32>
    %11 = vector.broadcast %10 : vector<1x128xf32> to vector<8x128xf32>
    %12 = arith.addf %9, %11 : vector<8x128xf32>
    %cst_11 = arith.constant 0.000000e+00 : f32
    %13 = vector.broadcast %cst_11 : f32 to vector<8x128xf32>
    %14 = arith.maximumf %12, %13 : vector<8x128xf32>
    %c0_12 = arith.constant 0 : index
    %c0_13 = arith.constant 0 : index
    %15 = vector.load %arg5[%c0_12, %c0_13] : memref<128x256xf32, #tpu.memory_space<vmem>>, vector<128x256xf32>
    %cst_14 = arith.constant dense<0.000000e+00> : vector<8x256xf32>
    %16 = tpu.matmul %14, %15, %cst_14 {dimension_numbers = #tpu.dot_dimension_numbers<[1], [0], [0], [1], [0, 0, 1, 1], [], []>} : vector<8x128xf32>, vector<128x256xf32>, vector<8x256xf32> -> vector<8x256xf32>
    %c0_15 = arith.constant 0 : index
    %c0_16 = arith.constant 0 : index
    %17 = vector.load %arg6[%c0_15, %c0_16] : memref<1x256xf32, #tpu.memory_space<vmem>>, vector<1x256xf32>
    %18 = vector.broadcast %17 : vector<1x256xf32> to vector<8x256xf32>
    %19 = arith.addf %16, %18 : vector<8x256xf32>
    %cst_17 = arith.constant dense<0xFF800000> : vector<8xf32>
    %20 = vector.multi_reduction <maximumf>, %19, %cst_17 [1] : vector<8x256xf32> to vector<8xf32>
    %21 = vector.shape_cast %20 : vector<8xf32> to vector<8x1xf32>
    %22 = vector.broadcast %21 : vector<8x1xf32> to vector<8x256xf32>
    %23 = arith.subf %19, %22 : vector<8x256xf32>
    %24 = math.exp %23 : vector<8x256xf32>
    %c0_18 = arith.constant 0 : index
    %c0_19 = arith.constant 0 : index
    %25 = vector.load %arg7[%c0_18, %c0_19] : memref<256x256xf32, #tpu.memory_space<vmem>>, vector<256x256xf32>
    %cst_20 = arith.constant dense<0.000000e+00> : vector<8x256xf32>
    %26 = tpu.matmul %24, %25, %cst_20 {dimension_numbers = #tpu.dot_dimension_numbers<[1], [0], [0], [1], [0, 0, 1, 1], [], []>} : vector<8x256xf32>, vector<256x256xf32>, vector<8x256xf32> -> vector<8x256xf32>
    %27 = vector.extract_strided_slice %26 {offsets = [0, 0], sizes = [8, 128], strides = [1, 1]} : vector<8x256xf32> to vector<8x128xf32>
    %28 = vector.extract_strided_slice %26 {offsets = [0, 128], sizes = [8, 128], strides = [1, 1]} : vector<8x256xf32> to vector<8x128xf32>
    %cst_21 = arith.constant 1.000000e-30 : f32
    %29 = vector.broadcast %cst_21 : f32 to vector<8x128xf32>
    %30 = arith.maximumf %28, %29 : vector<8x128xf32>
    %31 = arith.divf %27, %30 : vector<8x128xf32>
    %c0_22 = arith.constant 0 : index
    %c0_23 = arith.constant 0 : index
    %32 = vector.load %arg8[%c0_22, %c0_23] : memref<8x128xf32, #tpu.memory_space<vmem>>, vector<8x128xf32>
    tpu.vector_store %arg8[%c0_22, %c0_23], %31 {strides = array<i32>} : memref<8x128xf32, #tpu.memory_space<vmem>>, vector<8x128xf32>,
    return
  }
}

</mosaic_0001>

<llo_original>
// kernel: distributional_network_forward.1
$region0: #{distributional_network_forward.1}
  #allocation0 [shape = 'u32[]', space=smem, size = 0x4, offset = 0x4, fixed_abs, tag = 'smem constant byte address 0x4 - core index']
  #allocation1 [shape = 'u32[72,128]{1,0:T(1,128)}', space=vmem, size = 0x9000, scoped, tag = 'internal scratch']
  %s0 = inlined_call_operand.hbm [shape: f32[8,32], index: 0, kind: input, shape index: {}]
  %s1 = inlined_call_operand.hbm [shape: f32[32,128], index: 1, kind: input, shape index: {}]
  %s2 = inlined_call_operand.vmem [shape: f32[1,128], index: 2, kind: input, shape index: {}]
  %s3 = inlined_call_operand.hbm [shape: f32[128,128], index: 3, kind: input, shape index: {}]
  %s4 = inlined_call_operand.hbm [shape: f32[1,128], index: 4, kind: input, shape index: {}]
  %s5 = inlined_call_operand.hbm [shape: f32[128,256], index: 5, kind: input, shape index: {}]
  %s6 = inlined_call_operand.vmem [shape: f32[1,256], index: 6, kind: input, shape index: {}]
  %s7 = inlined_call_operand.hbm [shape: f32[256,256], index: 7, kind: input, shape index: {}]
  %s8 = inlined_call_operand.vmem [shape: f32[8,128], index: 8, kind: output, shape index: {}]
  %s9 = sld [smem:[#allocation0]]
  $region66: #{distributional_network_forward.1} parent=0
    _
  %s11 = ssub.s32 1, %s9
  %s12 = scalar_select 0, %s11, %s9
  $region1: #{distributional_network_forward.1} parent=0
    #allocation2 [shape = 'u8[4096]{0}', space=vmem, size = 0x1000, scoped, tag = 'input window, operand 0, single buffered']
    #allocation3 [shape = 's32[1]{0}', space=sflag, size = 0x4, scoped, tag = 'scoped memory for distributional_network_forward.1']
    #allocation4 [shape = 'u8[16384]{0}', space=vmem, size = 0x4000, scoped, tag = 'input window, operand 1, single buffered']
    #allocation5 [shape = 's32[1]{0}', space=sflag, size = 0x4, scoped, tag = 'scoped memory for distributional_network_forward.1']
    #allocation6 [shape = 'u8[65536]{0}', space=vmem, size = 0x10000, scoped, tag = 'input window, operand 3, single buffered']
    #allocation7 [shape = 'u8[512]{0}', space=vmem, size = 0x400, scoped, tag = 'input window, operand 4, single buffered']
    #allocation8 [shape = 's32[1]{0}', space=sflag, size = 0x4, scoped, tag = 'scoped memory for distributional_network_forward.1']
    #allocation9 [shape = 'u8[131072]{0}', space=vmem, size = 0x20000, scoped, tag = 'input window, operand 5, single buffered']
    #allocation10 [shape = 'u8[262144]{0}', space=vmem, size = 0x40000, scoped, tag = 'input window, operand 7, single buffered']
    #allocation11 [shape = 's32[1]{0}', space=sflag, size = 0x4, scoped, tag = 'scoped memory for distributional_network_forward.1']
    %13 = vsyncpa [#allocation3], 0
    %14 = vsyncpa [#allocation5], 0
    %15 = vsyncpa [#allocation8], 0
    %16 = vsyncpa [#allocation11], 0
    // Predicated region
    $region2: #{distributional_network_forward.1} parent=1 // pred_check
      _
    $region3: #{distributional_network_forward.1} parent=1 // pred_check_branch
      %18 = sbr.rel (0) target = $region5
    $region4: #{distributional_network_forward.1} parent=1 // pred_region
      %20 = vsyncadd [#allocation3], 0
      %s22 = sshll.u32 %s0, 4
      %s23 = int_to_ptr.hbm [resolvable:$true] %s22
      %s24 = sshll.u32 [#allocation2], 4
      %s25 = int_to_ptr.vmem [resolvable:$true] %s24
      %27 = dma.hbm_to_vmem [thread:$0]  %s23, 128, %s25, [#allocation3]
    $region5: #{distributional_network_forward.1} parent=1 // pred_fallthru
      _
    // Predicated region
    $region6: #{distributional_network_forward.1} parent=1 // pred_check
      _
    $region7: #{distributional_network_forward.1} parent=1 // pred_check_branch
      %29 = sbr.rel (0) target = $region9
    $region8: #{distributional_network_forward.1} parent=1 // pred_region
      %31 = vsyncadd [#allocation5], 0
      %s32 = sshll.u32 %s1, 4
      %s33 = int_to_ptr.hbm [resolvable:$true] %s32
      %s34 = sshll.u32 [#allocation4], 4
      %s35 = int_to_ptr.vmem [resolvable:$true] %s34
      %40 = dma.hbm_to_vmem [thread:$0]  %s33, 512, %s35, [#allocation5], 128, 128, 8
    $region9: #{distributional_network_forward.1} parent=1 // pred_fallthru
      _
    // Predicated region
    $region10: #{distributional_network_forward.1} parent=1 // pred_check
      _
    $region11: #{distributional_network_forward.1} parent=1 // pred_check_branch
      %42 = sbr.rel (0) target = $region13
    $region12: #{distributional_network_forward.1} parent=1 // pred_region
      _
    $region13: #{distributional_network_forward.1} parent=1 // pred_fallthru
      _
    // Predicated region
    $region14: #{distributional_network_forward.1} parent=1 // pred_check
      _
    $region15: #{distributional_network_forward.1} parent=1 // pred_check_branch
      %44 = sbr.rel (0) target = $region17
    $region16: #{distributional_network_forward.1} parent=1 // pred_region
      %46 = vsyncadd [#allocation5], 0
      %s47 = sshll.u32 %s3, 4
      %s48 = int_to_ptr.hbm [resolvable:$true] %s47
      %s49 = sshll.u32 [#allocation6], 4
      %s50 = int_to_ptr.vmem [resolvable:$true] %s49
      %55 = dma.hbm_to_vmem [thread:$0]  %s48, 2048, %s50, [#allocation5], 128, 128, 8
    $region17: #{distributional_network_forward.1} parent=1 // pred_fallthru
      _
    // Predicated region
    $region18: #{distributional_network_forward.1} parent=1 // pred_check
      _
    $region19: #{distributional_network_forward.1} parent=1 // pred_check_branch
      %57 = sbr.rel (0) target = $region21
    $region20: #{distributional_network_forward.1} parent=1 // pred_region
      %59 = vsyncadd [#allocation8], 0
      %s61 = sshll.u32 %s4, 4
      %s62 = int_to_ptr.hbm [resolvable:$true] %s61
      %s63 = sshll.u32 [#allocation7], 4
      %s64 = int_to_ptr.vmem [resolvable:$true] %s63
      %66 = dma.hbm_to_vmem [thread:$0]  %s62, 16, %s64, [#allocation8]
    $region21: #{distributional_network_forward.1} parent=1 // pred_fallthru
      _
    // Predicated region
    $region22: #{distributional_network_forward.1} parent=1 // pred_check
      _
    $region23: #{distributional_network_forward.1} parent=1 // pred_check_branch
      %68 = sbr.rel (0) target = $region25
    $region24: #{distributional_network_forward.1} parent=1 // pred_region
      %70 = vsyncadd [#allocation8], 0
      %s71 = sshll.u32 %s5, 4
      %s72 = int_to_ptr.hbm [resolvable:$true] %s71
      %s73 = sshll.u32 [#allocation9], 4
      %s74 = int_to_ptr.vmem [resolvable:$true] %s73
      %79 = dma.hbm_to_vmem [thread:$0]  %s72, 4096, %s74, [#allocation8], 256, 256, 16
    $region25: #{distributional_network_forward.1} parent=1 // pred_fallthru
      _
    // Predicated region
    $region26: #{distributional_network_forward.1} parent=1 // pred_check
      _
    $region27: #{distributional_network_forward.1} parent=1 // pred_check_branch
      %81 = sbr.rel (0) target = $region29
    $region28: #{distributional_network_forward.1} parent=1 // pred_region
      _
    $region29: #{distributional_network_forward.1} parent=1 // pred_fallthru
      _
    // Predicated region
    $region30: #{distributional_network_forward.1} parent=1 // pred_check
      _
    $region31: #{distributional_network_forward.1} parent=1 // pred_check_branch
      %83 = sbr.rel (0) target = $region33
    $region32: #{distributional_network_forward.1} parent=1 // pred_region
      %85 = vsyncadd [#allocation11], 0
      %s86 = sshll.u32 %s7, 4
      %s87 = int_to_ptr.hbm [resolvable:$true] %s86
      %s88 = sshll.u32 [#allocation10], 4
      %s89 = int_to_ptr.vmem [resolvable:$true] %s88
      %94 = dma.hbm_to_vmem [thread:$0]  %s87, 8192, %s89, [#allocation11], 256, 256, 16
    $region33: #{distributional_network_forward.1} parent=1 // pred_fallthru
      _
    // Predicated region
    $region34: #{distributional_network_forward.1} parent=1 // pred_check
      _
    $region35: #{distributional_network_forward.1} parent=1 // pred_check_branch
      %96 = sbr.rel (0) target = $region37
    $region36: #{distributional_network_forward.1} parent=1 // pred_region
      %98 = dma.done [#allocation3], 128
    $region37: #{distributional_network_forward.1} parent=1 // pred_fallthru
      _
    // Predicated region
    $region38: #{distributional_network_forward.1} parent=1 // pred_check
      _
    $region39: #{distributional_network_forward.1} parent=1 // pred_check_branch
      %100 = sbr.rel (0) target = $region41
    $region40: #{distributional_network_forward.1} parent=1 // pred_region
      %102 = dma.done [#allocation5], 512
    $region41: #{distributional_network_forward.1} parent=1 // pred_fallthru
      _
    // Predicated region
    $region42: #{distributional_network_forward.1} parent=1 // pred_check
      _
    $region43: #{distributional_network_forward.1} parent=1 // pred_check_branch
      %104 = sbr.rel (0) target = $region45
    $region44: #{distributional_network_forward.1} parent=1 // pred_region
      %106 = dma.done [#allocation5], 2048
    $region45: #{distributional_network_forward.1} parent=1 // pred_fallthru
      _
    // Predicated region
    $region46: #{distributional_network_forward.1} parent=1 // pred_check
      _
    $region47: #{distributional_network_forward.1} parent=1 // pred_check_branch
      %108 = sbr.rel (0) target = $region49
    $region48: #{distributional_network_forward.1} parent=1 // pred_region
      %110 = dma.done [#allocation8], 16
    $region49: #{distributional_network_forward.1} parent=1 // pred_fallthru
      _
    // Predicated region
    $region50: #{distributional_network_forward.1} parent=1 // pred_check
      _
    $region51: #{distributional_network_forward.1} parent=1 // pred_check_branch
      %112 = sbr.rel (0) target = $region53
    $region52: #{distributional_network_forward.1} parent=1 // pred_region
      %114 = dma.done [#allocation8], 4096
    $region53: #{distributional_network_forward.1} parent=1 // pred_fallthru
      _
    // Predicated region
    $region54: #{distributional_network_forward.1} parent=1 // pred_check
      _
    $region55: #{distributional_network_forward.1} parent=1 // pred_check_branch
      %116 = sbr.rel (0) target = $region57
    $region56: #{distributional_network_forward.1} parent=1 // pred_region
      %118 = dma.done [#allocation11], 8192
    $region57: #{distributional_network_forward.1} parent=1 // pred_fallthru
      _
    %v119 = vld [vmem:[#allocation2] sm:$0xff]
    %v120 = vld [vmem:[#allocation4] sm:$0xff]
    %v121 = vld [vmem:[#allocation4 + $0x8] sm:$0xff]
    %v122 = vld [vmem:[#allocation4 + $0x10] sm:$0xff]
    %v123 = vld [vmem:[#allocation4 + $0x18] sm:$0xff]
    %v124 = vld [vmem:[%s2] sm:$0x1]
    %v126 = vperm.slane %v124, 0
    %vm128 = vcmask 261120
    %v130 = vsel %vm128, %v119, 0
    %132 = vmatpush.msra.mxu0 0.0
    %133 = vmatpush.msra.mxu0 0.0
    %134 = vmatpush.msra.mxu0 0.0
    %135 = vmatpush.msra.mxu0 0.0
    %136 = vmatpush.msra.mxu0 0.0
    %137 = vmatpush.msra.mxu0 0.0
    %138 = vmatpush.msra.mxu0 0.0
    %139 = vmatpush.msra.mxu0 0.0
    %140 = vmatpush.msra.mxu0 0.0
    %141 = vmatpush.msra.mxu0 0.0
    %142 = vmatpush.msra.mxu0 0.0
    %143 = vmatpush.msra.mxu0 0.0
    %144 = vmatpush.msra.mxu0 %v123
    %145 = vmatpush.msra.mxu0 %v122
    %146 = vmatpush.msra.mxu0 %v121
    %147 = vmatpush.msra.mxu0 %v120
    %148 = vmatmul.f32.gmra.mxu0 %v130
    %v149 = vpop.f32.mrf.mxu0
    %v150 = vadd.f32 %v126, %v149
    %151 = vdwg.mxu0
    %v152 = vmax.f32 %v150, 0.0
    %v153 = vld [vmem:[#allocation6] sm:$0xff]
    %v154 = vld [vmem:[#allocation6 + $0x8] sm:$0xff]
    %v155 = vld [vmem:[#allocation6 + $0x10] sm:$0xff]
    %v156 = vld [vmem:[#allocation6 + $0x18] sm:$0xff]
    %v157 = vld [vmem:[#allocation6 + $0x20] sm:$0xff]
    %v158 = vld [vmem:[#allocation6 + $0x28] sm:$0xff]
    %v159 = vld [vmem:[#allocation6 + $0x30] sm:$0xff]
    %v160 = vld [vmem:[#allocation6 + $0x38] sm:$0xff]
    %v161 = vld [vmem:[#allocation6 + $0x40] sm:$0xff]
    %v162 = vld [vmem:[#allocation6 + $0x48] sm:$0xff]
    %v163 = vld [vmem:[#allocation6 + $0x50] sm:$0xff]
    %v164 = vld [vmem:[#allocation6 + $0x58] sm:$0xff]
    %v165 = vld [vmem:[#allocation6 + $0x60] sm:$0xff]
    %v166 = vld [vmem:[#allocation6 + $0x68] sm:$0xff]
    %v167 = vld [vmem:[#allocation6 + $0x70] sm:$0xff]
    %v168 = vld [vmem:[#allocation6 + $0x78] sm:$0xff]
    %v169 = vld [vmem:[#allocation7] sm:$0x1]
    %v171 = vperm.slane %v169, 0
    %173 = vmatpush.msra.mxu0 %v168
    %174 = vmatpush.msra.mxu0 %v167
    %175 = vmatpush.msra.mxu0 %v166
    %176 = vmatpush.msra.mxu0 %v165
    %177 = vmatpush.msra.mxu0 %v164
    %178 = vmatpush.msra.mxu0 %v163
    %179 = vmatpush.msra.mxu0 %v162
    %180 = vmatpush.msra.mxu0 %v161
    %181 = vmatpush.msra.mxu0 %v160
    %182 = vmatpush.msra.mxu0 %v159
    %183 = vmatpush.msra.mxu0 %v158
    %184 = vmatpush.msra.mxu0 %v157
    %185 = vmatpush.msra.mxu0 %v156
    %186 = vmatpush.msra.mxu0 %v155
    %187 = vmatpush.msra.mxu0 %v154
    %188 = vmatpush.msra.mxu0 %v153
    %189 = vmatmul.f32.gmra.mxu0 %v152
    %v190 = vpop.f32.mrf.mxu0
    %v191 = vadd.f32 %v171, %v190
    %192 = vdwg.mxu0
    %v193 = vmax.f32 %v191, 0.0
    %v194 = vld [vmem:[#allocation9] sm:$0xff]
    %v195 = vld [vmem:[#allocation9 + $0x8] sm:$0xff]
    %v196 = vld [vmem:[#allocation9 + $0x10] sm:$0xff]
    %v197 = vld [vmem:[#allocation9 + $0x18] sm:$0xff]
    %v198 = vld [vmem:[#allocation9 + $0x20] sm:$0xff]
    %v199 = vld [vmem:[#allocation9 + $0x28] sm:$0xff]
    %v200 = vld [vmem:[#allocation9 + $0x30] sm:$0xff]
    %v201 = vld [vmem:[#allocation9 + $0x38] sm:$0xff]
    %v202 = vld [vmem:[#allocation9 + $0x40] sm:$0xff]
    %v203 = vld [vmem:[#allocation9 + $0x48] sm:$0xff]
    %v204 = vld [vmem:[#allocation9 + $0x50] sm:$0xff]
    %v205 = vld [vmem:[#allocation9 + $0x58] sm:$0xff]
    %v206 = vld [vmem:[#allocation9 + $0x60] sm:$0xff]
    %v207 = vld [vmem:[#allocation9 + $0x68] sm:$0xff]
    %v208 = vld [vmem:[#allocation9 + $0x70] sm:$0xff]
    %v209 = vld [vmem:[#allocation9 + $0x78] sm:$0xff]
    %v210 = vld [vmem:[#allocation9 + $0x80] sm:$0xff]
    %v211 = vld [vmem:[#allocation9 + $0x88] sm:$0xff]
    %v212 = vld [vmem:[#allocation9 + $0x90] sm:$0xff]
    %v213 = vld [vmem:[#allocation9 + $0x98] sm:$0xff]
    %v214 = vld [vmem:[#allocation9 + $0xa0] sm:$0xff]
    %v215 = vld [vmem:[#allocation9 + $0xa8] sm:$0xff]
    %v216 = vld [vmem:[#allocation9 + $0xb0] sm:$0xff]
    %v217 = vld [vmem:[#allocation9 + $0xb8] sm:$0xff]
    %v218 = vld [vmem:[#allocation9 + $0xc0] sm:$0xff]
    %v219 = vld [vmem:[#allocation9 + $0xc8] sm:$0xff]
    %v220 = vld [vmem:[#allocation9 + $0xd0] sm:$0xff]
    %v221 = vld [vmem:[#allocation9 + $0xd8] sm:$0xff]
    %v222 = vld [vmem:[#allocation9 + $0xe0] sm:$0xff]
    %v223 = vld [vmem:[#allocation9 + $0xe8] sm:$0xff]
    %v224 = vld [vmem:[#allocation9 + $0xf0] sm:$0xff]
    %v225 = vld [vmem:[#allocation9 + $0xf8] sm:$0xff]
    %v226 = vld [vmem:[%s6] sm:$0x3]
    %v228 = vperm.slane %v226, 0
    %v229 = vperm.slane %v226, 1
    %232 = vmatpush.msra.mxu0 %v224
    %233 = vmatpush.msra.mxu0 %v222
    %234 = vmatpush.msra.mxu0 %v220
    %235 = vmatpush.msra.mxu0 %v218
    %236 = vmatpush.msra.mxu0 %v216
    %237 = vmatpush.msra.mxu0 %v214
    %238 = vmatpush.msra.mxu0 %v212
    %239 = vmatpush.msra.mxu0 %v210
    %240 = vmatpush.msra.mxu0 %v208
    %241 = vmatpush.msra.mxu0 %v206
    %242 = vmatpush.msra.mxu0 %v204
    %243 = vmatpush.msra.mxu0 %v202
    %244 = vmatpush.msra.mxu0 %v200
    %245 = vmatpush.msra.mxu0 %v198
    %246 = vmatpush.msra.mxu0 %v196
    %247 = vmatpush.msra.mxu0 %v194
    %248 = vmatmul.f32.gmra.mxu0 %v193
    %v249 = vpop.f32.mrf.mxu0
    %v250 = vadd.f32 %v228, %v249
    %251 = vdwg.mxu0
    %252 = vmatpush.msra.mxu0 %v225
    %253 = vmatpush.msra.mxu0 %v223
    %254 = vmatpush.msra.mxu0 %v221
    %255 = vmatpush.msra.mxu0 %v219
    %256 = vmatpush.msra.mxu0 %v217
    %257 = vmatpush.msra.mxu0 %v215
    %258 = vmatpush.msra.mxu0 %v213
    %259 = vmatpush.msra.mxu0 %v211
    %260 = vmatpush.msra.mxu0 %v209
    %261 = vmatpush.msra.mxu0 %v207
    %262 = vmatpush.msra.mxu0 %v205
    %263 = vmatpush.msra.mxu0 %v203
    %264 = vmatpush.msra.mxu0 %v201
    %265 = vmatpush.msra.mxu0 %v199
    %266 = vmatpush.msra.mxu0 %v197
    %267 = vmatpush.msra.mxu0 %v195
    %268 = vmatmul.f32.gmra.mxu0 %v193
    %v269 = vpop.f32.mrf.mxu0
    %v270 = vadd.f32 %v229, %v269
    %271 = vdwg.mxu0
    %v272 = vmax.f32 %v250, %v270
    %273 = vmax.xlane.f32.xlu0 %v272
    %v274 = vpop.xlane.xlu0 %273
    %v275 = vsub.f32 %v250, %v274
    %v276 = vsub.f32 %v270, %v274
    %v277 = vmul.f32 %v275, 1.442695
    %v278 = vpow.pop %v277
    %v279 = vmul.f32 %v276, 1.442695
    %v280 = vpow.pop %v279
    %v281 = vld [vmem:[#allocation10] sm:$0xff]
    %v282 = vld [vmem:[#allocation10 + $0x8] sm:$0xff]
    %v283 = vld [vmem:[#allocation10 + $0x10] sm:$0xff]
    %v284 = vld [vmem:[#allocation10 + $0x18] sm:$0xff]
    %v285 = vld [vmem:[#allocation10 + $0x20] sm:$0xff]
    %v286 = vld [vmem:[#allocation10 + $0x28] sm:$0xff]
    %v287 = vld [vmem:[#allocation10 + $0x30] sm:$0xff]
    %v288 = vld [vmem:[#allocation10 + $0x38] sm:$0xff]
    %v289 = vld [vmem:[#allocation10 + $0x40] sm:$0xff]
    %v290 = vld [vmem:[#allocation10 + $0x48] sm:$0xff]
    %v291 = vld [vmem:[#allocation10 + $0x50] sm:$0xff]
    %v292 = vld [vmem:[#allocation10 + $0x58] sm:$0xff]
    %v293 = vld [vmem:[#allocation10 + $0x60] sm:$0xff]
    %v294 = vld [vmem:[#allocation10 + $0x68] sm:$0xff]
    %v295 = vld [vmem:[#allocation10 + $0x70] sm:$0xff]
    %v296 = vld [vmem:[#allocation10 + $0x78] sm:$0xff]
    %v297 = vld [vmem:[#allocation10 + $0x80] sm:$0xff]
    %v298 = vld [vmem:[#allocation10 + $0x88] sm:$0xff]
    %v299 = vld [vmem:[#allocation10 + $0x90] sm:$0xff]
    %v300 = vld [vmem:[#allocation10 + $0x98] sm:$0xff]
    %v301 = vld [vmem:[#allocation10 + $0xa0] sm:$0xff]
    %v302 = vld [vmem:[#allocation10 + $0xa8] sm:$0xff]
    %v303 = vld [vmem:[#allocation10 + $0xb0] sm:$0xff]
    %v304 = vld [vmem:[#allocation10 + $0xb8] sm:$0xff]
    %v305 = vld [vmem:[#allocation10 + $0xc0] sm:$0xff]
    %v306 = vld [vmem:[#allocation10 + $0xc8] sm:$0xff]
    %v307 = vld [vmem:[#allocation10 + $0xd0] sm:$0xff]
    %v308 = vld [vmem:[#allocation10 + $0xd8] sm:$0xff]
    %v309 = vld [vmem:[#allocation10 + $0xe0] sm:$0xff]
    %v310 = vld [vmem:[#allocation10 + $0xe8] sm:$0xff]
    %v311 = vld [vmem:[#allocation10 + $0xf0] sm:$0xff]
    %v312 = vld [vmem:[#allocation10 + $0xf8] sm:$0xff]
    %v313 = vld [vmem:[#allocation10 + $0x100] sm:$0xff]
    %v314 = vld [vmem:[#allocation10 + $0x108] sm:$0xff]
    %v315 = vld [vmem:[#allocation10 + $0x110] sm:$0xff]
    %v316 = vld [vmem:[#allocation10 + $0x118] sm:$0xff]
    %v317 = vld [vmem:[#allocation10 + $0x120] sm:$0xff]
    %v318 = vld [vmem:[#allocation10 + $0x128] sm:$0xff]
    %v319 = vld [vmem:[#allocation10 + $0x130] sm:$0xff]
    %v320 = vld [vmem:[#allocation10 + $0x138] sm:$0xff]
    %v321 = vld [vmem:[#allocation10 + $0x140] sm:$0xff]
    %v322 = vld [vmem:[#allocation10 + $0x148] sm:$0xff]
    %v323 = vld [vmem:[#allocation10 + $0x150] sm:$0xff]
    %v324 = vld [vmem:[#allocation10 + $0x158] sm:$0xff]
    %v325 = vld [vmem:[#allocation10 + $0x160] sm:$0xff]
    %v326 = vld [vmem:[#allocation10 + $0x168] sm:$0xff]
    %v327 = vld [vmem:[#allocation10 + $0x170] sm:$0xff]
    %v328 = vld [vmem:[#allocation10 + $0x178] sm:$0xff]
    %v329 = vld [vmem:[#allocation10 + $0x180] sm:$0xff]
    %v330 = vld [vmem:[#allocation10 + $0x188] sm:$0xff]
    %v331 = vld [vmem:[#allocation10 + $0x190] sm:$0xff]
    %v332 = vld [vmem:[#allocation10 + $0x198] sm:$0xff]
    %v333 = vld [vmem:[#allocation10 + $0x1a0] sm:$0xff]
    %v334 = vld [vmem:[#allocation10 + $0x1a8] sm:$0xff]
    %v335 = vld [vmem:[#allocation10 + $0x1b0] sm:$0xff]
    %v336 = vld [vmem:[#allocation10 + $0x1b8] sm:$0xff]
    %v337 = vld [vmem:[#allocation10 + $0x1c0] sm:$0xff]
    %v338 = vld [vmem:[#allocation10 + $0x1c8] sm:$0xff]
    %v339 = vld [vmem:[#allocation10 + $0x1d0] sm:$0xff]
    %v340 = vld [vmem:[#allocation10 + $0x1d8] sm:$0xff]
    %v341 = vld [vmem:[#allocation10 + $0x1e0] sm:$0xff]
    %v342 = vld [vmem:[#allocation10 + $0x1e8] sm:$0xff]
    %v343 = vld [vmem:[#allocation10 + $0x1f0] sm:$0xff]
    %v344 = vld [vmem:[#allocation10 + $0x1f8] sm:$0xff]
    %345 = vmatpush.msra.mxu0 %v311
    %346 = vmatpush.msra.mxu0 %v309
    %347 = vmatpush.msra.mxu0 %v307
    %348 = vmatpush.msra.mxu0 %v305
    %349 = vmatpush.msra.mxu0 %v303
    %350 = vmatpush.msra.mxu0 %v301
    %351 = vmatpush.msra.mxu0 %v299
    %352 = vmatpush.msra.mxu0 %v297
    %353 = vmatpush.msra.mxu0 %v295
    %354 = vmatpush.msra.mxu0 %v293
    %355 = vmatpush.msra.mxu0 %v291
    %356 = vmatpush.msra.mxu0 %v289
    %357 = vmatpush.msra.mxu0 %v287
    %358 = vmatpush.msra.mxu0 %v285
    %359 = vmatpush.msra.mxu0 %v283
    %360 = vmatpush.msra.mxu0 %v281
    %361 = vmatmul.f32.gmra.mxu0 %v278
    %v362 = vpop.f32.mrf.mxu0
    %v363 = vadd.f32 0.0, %v362
    %364 = vdwg.mxu0
    %365 = vmatpush.msra.mxu0 %v343
    %366 = vmatpush.msra.mxu0 %v341
    %367 = vmatpush.msra.mxu0 %v339
    %368 = vmatpush.msra.mxu0 %v337
    %369 = vmatpush.msra.mxu0 %v335
    %370 = vmatpush.msra.mxu0 %v333
    %371 = vmatpush.msra.mxu0 %v331
    %372 = vmatpush.msra.mxu0 %v329
    %373 = vmatpush.msra.mxu0 %v327
    %374 = vmatpush.msra.mxu0 %v325
    %375 = vmatpush.msra.mxu0 %v323
    %376 = vmatpush.msra.mxu0 %v321
    %377 = vmatpush.msra.mxu0 %v319
    %378 = vmatpush.msra.mxu0 %v317
    %379 = vmatpush.msra.mxu0 %v315
    %380 = vmatpush.msra.mxu0 %v313
    %381 = vmatmul.f32.gmra.mxu0 %v280
    %v382 = vpop.f32.mrf.mxu0
    %v383 = vadd.f32 %v363, %v382
    %384 = vdwg.mxu0
    %385 = vmatpush.msra.mxu0 %v312
    %386 = vmatpush.msra.mxu0 %v310
    %387 = vmatpush.msra.mxu0 %v308
    %388 = vmatpush.msra.mxu0 %v306
    %389 = vmatpush.msra.mxu0 %v304
    %390 = vmatpush.msra.mxu0 %v302
    %391 = vmatpush.msra.mxu0 %v300
    %392 = vmatpush.msra.mxu0 %v298
    %393 = vmatpush.msra.mxu0 %v296
    %394 = vmatpush.msra.mxu0 %v294
    %395 = vmatpush.msra.mxu0 %v292
    %396 = vmatpush.msra.mxu0 %v290
    %397 = vmatpush.msra.mxu0 %v288
    %398 = vmatpush.msra.mxu0 %v286
    %399 = vmatpush.msra.mxu0 %v284
    %400 = vmatpush.msra.mxu0 %v282
    %401 = vmatmul.f32.gmra.mxu0 %v278
    %v402 = vpop.f32.mrf.mxu0
    %v403 = vadd.f32 0.0, %v402
    %404 = vdwg.mxu0
    %405 = vmatpush.msra.mxu0 %v344
    %406 = vmatpush.msra.mxu0 %v342
    %407 = vmatpush.msra.mxu0 %v340
    %408 = vmatpush.msra.mxu0 %v338
    %409 = vmatpush.msra.mxu0 %v336
    %410 = vmatpush.msra.mxu0 %v334
    %411 = vmatpush.msra.mxu0 %v332
    %412 = vmatpush.msra.mxu0 %v330
    %413 = vmatpush.msra.mxu0 %v328
    %414 = vmatpush.msra.mxu0 %v326
    %415 = vmatpush.msra.mxu0 %v324
    %416 = vmatpush.msra.mxu0 %v322
    %417 = vmatpush.msra.mxu0 %v320
    %418 = vmatpush.msra.mxu0 %v318
    %419 = vmatpush.msra.mxu0 %v316
    %420 = vmatpush.msra.mxu0 %v314
    %421 = vmatmul.f32.gmra.mxu0 %v280
    %v422 = vpop.f32.mrf.mxu0
    %v423 = vadd.f32 %v403, %v422
    %424 = vdwg.mxu0
    %v425 = vmax.f32 %v423, 1e-30
    %v426 = vrcp.pop %v425
    %v427 = vmul.f32 %v425, %v426
    %v428 = vsub.f32 1.0, %v427
    %v429 = vmul.f32 %v426, %v428
    %v430 = vadd.f32 %v426, %v429
    %vm431 = vweird.f32 %v425
    %vm432 = vweird.f32 %v426
    %vm433 = vmor %vm431, %vm432
    %v434 = vsel %vm433, %v426, %v430
    %v435 = vand.u32 2147483647, %v425
    %vm436 = vcmp.eq.f32.partialorder %v435, 8.507059e+37
    %v437 = vand.u32 %v425, 2147483648
    %v438 = vor.u32 1.1754944e-38, %v437
    %v439 = vsel %vm436, %v438, %v434
    %v440 = vmul.f32 %v383, %v439
    %441 = vst [vmem:[%s8] sm:$0xff] %v440
    // Predicated region
    $region58: #{distributional_network_forward.1} parent=1 // pred_check
      _
    $region59: #{distributional_network_forward.1} parent=1 // pred_check_branch
      %443 = sbr.rel (0) target = $region61
    $region60: #{distributional_network_forward.1} parent=1 // pred_region
      _
    $region61: #{distributional_network_forward.1} parent=1 // pred_fallthru
      _
    // Predicated region
    $region62: #{distributional_network_forward.1} parent=1 // pred_check
      _
    $region63: #{distributional_network_forward.1} parent=1 // pred_check_branch
      %445 = sbr.rel (0) target = $region65
    $region64: #{distributional_network_forward.1} parent=1 // pred_region
      _
    $region65: #{distributional_network_forward.1} parent=1 // pred_fallthru
      _
    %446 = vsyncpa [#allocation3], 1
    %447 = vsyncpa [#allocation5], 1
    %448 = vsyncpa [#allocation8], 1
    %449 = vsyncpa [#allocation11], 1

</llo_original>
